<compile_context>
chip_gen: v7x
topology: tpu7x:2x2x1
jax: 0.10.0
libtpu: 0.0.40
codegen_flags: <defaults>
</compile_context>

<pallas_src>
import numpy as np
import jax
import jax.numpy as jnp
from jax import lax
from jax.experimental import pallas as pl
from jax.experimental.pallas import tpu as pltpu

POOLED_HEIGHT = 2
ROI_BLOCK = 8            # ROIs processed per grid step (static in-kernel unroll)


def _round_up(x, m):
    return (x + m - 1) // m * m


# ----------------------------- stage 1: conv + batch max -----------------------------
def conv_batchmax_kernel(w_ref, b_ref, imgT_ref, featT_ref):
    # w_ref   : (3, 3) SMEM f32   Conv2d(1,1,3) weight
    # b_ref   : (1,)   SMEM f32   Conv2d bias
    # imgT_ref: (B, WP+2, HP+2) VMEM  image, transposed (w sublane, h lane) + zero-padded
    # featT_ref: (WP, HP) VMEM output: batch-maxed valid 3x3 conv, transposed
    B = imgT_ref.shape[0]
    WP, HP = featT_ref.shape
    xT = imgT_ref[...]
    acc = jnp.full((B, WP, HP), b_ref[0], jnp.float32)
    # TODO(synk): at large B*H*W replace per-tap lane/sublane-offset slices with pltpu.roll
    # shifts accumulated into a full-size buffer (XLU slot), cropping once at the end.
    for kh in range(3):
        for kw in range(3):
            acc = acc + w_ref[kh, kw] * xT[:, kw:kw + WP, kh:kh + HP]
    featT_ref[...] = jnp.max(acc, axis=0)       # (WP, HP); pad region is always masked later


# ----------------------------- stage 2: ROI max pooling ------------------------------
def make_roipool_kernel(wwin):
    def roipool_kernel(hs_ref, he_ref, w0_ref, featT_ref, wb_ref, o_ref):
        # hs_ref/he_ref: (PH, NR_PAD) int32 SMEM  h window [hstart, hend) per (ph, roi)
        # w0_ref       : (NR_PAD,)    int32 SMEM  8-aligned sublane slice origin per roi
        # featT_ref    : (WP, HP)     f32  VMEM   batch-maxed conv map (w sublane, h lane)
        # wb_ref       : (ROI_BLOCK, 2, MAXPW_PAD) int32 VMEM  [wstart; wend) rows, pw on lanes
        # o_ref        : (ROI_BLOCK, PH, MAXPW_PAD) f32 VMEM   lane-dense output block
        blk = pl.program_id(0)
        rblock, ph_tot, maxpw_pad = o_ref.shape
        hp = featT_ref.shape[1]
        NEG = jnp.float32(-3.0e38)

        # iotas hoisted out of the ROI loop (broadcast_in_dim is not CSE'd by JAX)
        h_idx = lax.broadcasted_iota(jnp.int32, (wwin, hp), 1)          # lane coord = h
        w_loc = lax.broadcasted_iota(jnp.int32, (wwin, maxpw_pad), 0)   # sublane offset in window

        for r in range(rblock):                                          # static unroll
            n = blk * rblock + r
            w0 = pl.multiple_of(w0_ref[n], 8)                            # aligned window origin
            win = featT_ref[pl.ds(w0, wwin), :]                          # (wwin, HP) per-ROI slab
            ws_row = wb_ref[r, 0:1, :]                                   # (1, maxpw_pad) wstart
            we_row = wb_ref[r, 1:2, :]                                   # (1, maxpw_pad) wend
            w_glob = w_loc + w0                                          # global w coordinate
            col_mask = (w_glob >= ws_row) & (w_glob < we_row)            # (wwin, maxpw_pad)
            valid = we_row > ws_row                                      # padded/invalid bins -> 0
            for ph in range(ph_tot):                                     # PH == 2, static unroll
                hs = hs_ref[ph, n]
                he = he_ref[ph, n]
                hmask = (h_idx >= hs) & (h_idx < he)                     # (wwin, HP)
                wmax = jnp.max(jnp.where(hmask, win, NEG),
                               axis=1, keepdims=True)                    # (wwin, 1): h-bin max
                vals = jnp.max(jnp.where(col_mask, wmax, NEG),
                               axis=0, keepdims=True)                    # (1, maxpw_pad)
                o_ref[r, ph:ph + 1, :] = jnp.where(valid, vals, jnp.float32(0.0))
    return roipool_kernel


# ------------------------------- host-side helpers -----------------------------------
def _roi_windows(rois_np, Ho, Wo, pooled_height):
    """All bin bounds, computed with the reference's float64 math (exact integers)."""
    rois = np.asarray(rois_np, np.float64)
    n_rois = rois.shape[0]
    max_ratio = float(np.max((rois[:, 3] - rois[:, 1]) / (rois[:, 4] - rois[:, 2])))
    max_pw = int(np.ceil(max_ratio) * pooled_height)

    hs = np.zeros((pooled_height, n_rois), np.int32)
    he = np.zeros((pooled_height, n_rois), np.int32)
    ws = np.zeros((n_rois, max_pw), np.int32)
    we = np.zeros((n_rois, max_pw), np.int32)
    for n in range(n_rois):
        rsw = np.round(rois[n, 1])
        rsh = np.round(rois[n, 2])
        rw = max(rois[n, 3] - rois[n, 1], 1.0)
        rh = max(rois[n, 4] - rois[n, 2], 1.0)
        pw_n = int(np.ceil(rw / rh * pooled_height))
        bw = rw / pw_n
        bh = rh / pooled_height
        for ph in range(pooled_height):
            hs[ph, n] = int(min(max(np.floor(ph * bh) + rsh, 0), Ho))
            he[ph, n] = int(min(max(np.ceil((ph + 1) * bh) + rsh, 0), Ho))
        for pw in range(pw_n):
            ws[n, pw] = int(min(max(np.floor(pw * bw) + rsw, 0), Wo))
            we[n, pw] = int(min(max(np.ceil((pw + 1) * bw) + rsw, 0), Wo))
        # pw >= pw_n stay (0, 0): empty window -> bin marked invalid -> output 0 (matches ref).

    w0 = (ws[:, 0] // 8 * 8).astype(np.int32)          # 8-aligned per-ROI slice origin
    span = int(np.max(np.max(we, axis=1) - w0)) if n_rois else 1
    return max_pw, hs, he, ws, we, w0, max(span, 1)


def scipy_conv2d_forward(img, rois_np, weight, bias):
    """img: (B,1,H,W) f32, rois_np: (num_rois,5) host array, weight: (1,1,3,3), bias: (1,)."""
    B, C, H, W = img.shape
    assert C == 1
    Ho, Wo = H - 2, W - 2

    # max_pooled_weight is a data-dependent output shape in the reference; it (and all bin
    # bounds) must be host-derived from the concrete ROI values.
    max_pw, hs, he, ws, we, w0, span = _roi_windows(rois_np, Ho, Wo, POOLED_HEIGHT)
    n_rois = hs.shape[1]

    WWIN = max(_round_up(span, 8), 8)            # static per-ROI sublane window width
    WP = _round_up(Wo + WWIN, 8)                 # feature-map padding so pl.ds never reads OOB
    HP = _round_up(Ho, 128)
    MAXPW_PAD = _round_up(max_pw, 128)           # lane-dense output tile
    NR_PAD = _round_up(n_rois, ROI_BLOCK)

    # ---- stage 1: conv + batch max (image only lives in VMEM for this call) ----
    imgT = jnp.transpose(img[:, 0], (0, 2, 1))                            # (B, W, H)
    imgT = jnp.pad(imgT, ((0, 0), (0, WP + 2 - W), (0, HP + 2 - H)))      # zero pad (masked later)

    featT = pl.pallas_call(
        conv_batchmax_kernel,
        out_shape=jax.ShapeDtypeStruct((WP, HP), jnp.float32),
        grid=(1,),
        in_specs=[
            pl.BlockSpec(memory_space=pltpu.MemorySpace.SMEM),            # weight (3, 3)
            pl.BlockSpec(memory_space=pltpu.MemorySpace.SMEM),            # bias (1,)
            pl.BlockSpec((B, WP + 2, HP + 2), lambda i: (0, 0, 0)),       # image, single block
        ],
        out_specs=pl.BlockSpec((WP, HP), lambda i: (0, 0)),
        compiler_params=pltpu.CompilerParams(
            dimension_semantics=("arbitrary",),
            vmem_limit_bytes=32 * 1024 * 1024,
        ),
    )(weight[0, 0], bias, imgT)

    # ---- stage 2: ROI pooling over blocks of ROIs ----
    hs_tbl = np.zeros((POOLED_HEIGHT, NR_PAD), np.int32); hs_tbl[:, :n_rois] = hs
    he_tbl = np.zeros((POOLED_HEIGHT, NR_PAD), np.int32); he_tbl[:, :n_rois] = he
    w0_tbl = np.zeros((NR_PAD,), np.int32); w0_tbl[:n_rois] = w0
    wb = np.zeros((NR_PAD, 2, MAXPW_PAD), np.int32)
    wb[:n_rois, 0, :max_pw] = ws
    wb[:n_rois, 1, :max_pw] = we

    out = pl.pallas_call(
        make_roipool_kernel(WWIN),
        out_shape=jax.ShapeDtypeStruct((NR_PAD, POOLED_HEIGHT, MAXPW_PAD), jnp.float32),
        grid=(NR_PAD // ROI_BLOCK,),
        in_specs=[
            pl.BlockSpec(memory_space=pltpu.MemorySpace.SMEM),            # hstart (PH, NR_PAD)
            pl.BlockSpec(memory_space=pltpu.MemorySpace.SMEM),            # hend   (PH, NR_PAD)
            pl.BlockSpec(memory_space=pltpu.MemorySpace.SMEM),            # w0     (NR_PAD,)
            pl.BlockSpec((WP, HP), lambda b: (0, 0)),                     # feature map (shared)
            pl.BlockSpec((ROI_BLOCK, 2, MAXPW_PAD), lambda b: (b, 0, 0)),  # w-bound rows
        ],
        out_specs=pl.BlockSpec((ROI_BLOCK, POOLED_HEIGHT, MAXPW_PAD), lambda b: (b, 0, 0)),
        compiler_params=pltpu.CompilerParams(
            dimension_semantics=("parallel",),    # ROI blocks independent -> shard across TCs
            vmem_limit_bytes=32 * 1024 * 1024,
        ),
    )(jnp.asarray(hs_tbl), jnp.asarray(he_tbl), jnp.asarray(w0_tbl), featT, jnp.asarray(wb))

    # strip ROI / lane padding, add the channel dim: (num_rois, 1, PH, max_pw)
    return out[:n_rois, :, :max_pw][:, None]


# ------------------------------ numpy reference --------------------------------
def ref_forward(img_np, rois_np, w_np, b_np):
    B, _, H, W = img_np.shape
    Ho, Wo = H - 2, W - 2
    conv = np.zeros((B, 1, Ho, Wo), np.float32)
    for bi in range(B):
        for i in range(Ho):
            for j in range(Wo):
                conv[bi, 0, i, j] = np.sum(img_np[bi, 0, i:i + 3, j:j + 3] * w_np[0, 0]) + b_np[0]

    batch, num_channels, height, width = conv.shape
    ph_tot = POOLED_HEIGHT
    num_rois = rois_np.shape[0]
    max_ratio = max((rois_np[:, 3] - rois_np[:, 1]) / (rois_np[:, 4] - rois_np[:, 2]))
    max_pw = int(np.ceil(max_ratio) * ph_tot)
    output = np.zeros((num_rois, num_channels, ph_tot, max_pw), np.float32)
    for n in range(num_rois):
        roi_start_w = np.round(rois_np[n, 1])
        roi_start_h = np.round(rois_np[n, 2])
        rois_weight = max(rois_np[n, 3] - rois_np[n, 1], 1)
        rois_height = max(rois_np[n, 4] - rois_np[n, 2], 1)
        pooled_weight = int(np.ceil(float(rois_weight) / rois_height * ph_tot))
        bin_size_w = float(rois_weight) / pooled_weight
        bin_size_h = float(rois_height) / ph_tot
        for c in range(num_channels):
            for ph in range(ph_tot):
                for pw in range(pooled_weight):
                    hstart = int(min(max(np.floor(ph * bin_size_h) + roi_start_h, 0), height))
                    hend = int(min(max(np.ceil((ph + 1) * bin_size_h) + roi_start_h, 0), height))
                    wstart = int(min(max(np.floor(pw * bin_size_w) + roi_start_w, 0), width))
                    wend = int(min(max(np.ceil((pw + 1) * bin_size_w) + roi_start_w, 0), width))
                    output[n, c, ph, pw] = np.max(conv[:, c, hstart:hend, wstart:wend])
    return output


if __name__ == "__main__":
    key = jax.random.PRNGKey(0)
    k_img, k_w, k_b = jax.random.split(key, 3)
    img = jax.random.normal(k_img, (2, 1, 16, 16), jnp.float32)
    weight = jax.random.normal(k_w, (1, 1, 3, 3), jnp.float32) * 0.3   # Conv2d(1,1,3) weight
    bias = jax.random.normal(k_b, (1,), jnp.float32) * 0.1             # Conv2d bias

    # ROIs: [batch_idx (unused by the reference), x1, y1, x2, y2] on the 14x14 conv grid.
    rois_np = np.array([[0., 1., 2., 9., 6.],
                        [0., 0., 0., 6., 6.],
                        [1., 2., 1., 12., 5.]], dtype=np.float32)

    out = scipy_conv2d_forward(img, rois_np, weight, bias)
    out = jax.block_until_ready(out)

    ref = ref_forward(np.asarray(img), rois_np, np.asarray(weight), np.asarray(bias))
    assert out.shape == ref.shape, (out.shape, ref.shape)
    np.testing.assert_allclose(np.asarray(out), ref, rtol=1e-4, atol=1e-4)
    print("KERNEL_OK")
</pallas_src>

<mosaic_0001>
module attributes {stable_mosaic.version = 11 : i64} {
  func.func @conv_batchmax_kernel(%arg0: i32, %arg1: memref<3x3xf32, #tpu.memory_space<smem>>, %arg2: memref<1xf32, #tpu.memory_space<smem>>, %arg3: memref<2x34x130xf32, #tpu.memory_space<vmem>>, %arg4: memref<32x128xf32, #tpu.memory_space<vmem>>) attributes {dimension_semantics = [#tpu.dimension_semantics<arbitrary>], iteration_bounds = array<i64: 1>, scalar_prefetch = 0 : i64, scratch_operands = 0 : i64, tpu.core_type = #tpu.core_type<tc>, window_params = [{transform_indices = @transform_0, window_bounds = array<i64: 3, 3>}, {transform_indices = @transform_1, window_bounds = array<i64: 1>}, {pipeline_mode = #tpu.pipeline_mode<synchronous>, transform_indices = @transform_2, window_bounds = array<i64: 2, 34, 130>}, {pipeline_mode = #tpu.pipeline_mode<synchronous>, transform_indices = @transform_3, window_bounds = array<i64: 32, 128>}]} {
    %c0 = arith.constant 0 : index
    %c0_0 = arith.constant 0 : index
    %c0_1 = arith.constant 0 : index
    %0 = vector.load %arg3[%c0, %c0_0, %c0_1] : memref<2x34x130xf32, #tpu.memory_space<vmem>>, vector<2x34x130xf32>
    %c0_2 = arith.constant 0 : index
    %1 = memref.load %arg2[%c0_2] : memref<1xf32, #tpu.memory_space<smem>>
    %2 = vector.broadcast %1 : f32 to vector<2x32x128xf32>
    %c0_3 = arith.constant 0 : index
    %c0_4 = arith.constant 0 : index
    %3 = memref.load %arg1[%c0_3, %c0_4] : memref<3x3xf32, #tpu.memory_space<smem>>
    %4 = vector.extract_strided_slice %0 {offsets = [0, 0, 0], sizes = [2, 32, 128], strides = [1, 1, 1]} : vector<2x34x130xf32> to vector<2x32x128xf32>
    %5 = vector.broadcast %3 : f32 to vector<2x32x128xf32>
    %6 = arith.mulf %5, %4 : vector<2x32x128xf32>
    %7 = arith.addf %2, %6 : vector<2x32x128xf32>
    %c0_5 = arith.constant 0 : index
    %c1 = arith.constant 1 : index
    %8 = memref.load %arg1[%c0_5, %c1] : memref<3x3xf32, #tpu.memory_space<smem>>
    %9 = vector.extract_strided_slice %0 {offsets = [0, 1, 0], sizes = [2, 32, 128], strides = [1, 1, 1]} : vector<2x34x130xf32> to vector<2x32x128xf32>
    %10 = vector.broadcast %8 : f32 to vector<2x32x128xf32>
    %11 = arith.mulf %10, %9 : vector<2x32x128xf32>
    %12 = arith.addf %7, %11 : vector<2x32x128xf32>
    %c0_6 = arith.constant 0 : index
    %c2 = arith.constant 2 : index
    %13 = memref.load %arg1[%c0_6, %c2] : memref<3x3xf32, #tpu.memory_space<smem>>
    %14 = vector.extract_strided_slice %0 {offsets = [0, 2, 0], sizes = [2, 32, 128], strides = [1, 1, 1]} : vector<2x34x130xf32> to vector<2x32x128xf32>
    %15 = vector.broadcast %13 : f32 to vector<2x32x128xf32>
    %16 = arith.mulf %15, %14 : vector<2x32x128xf32>
    %17 = arith.addf %12, %16 : vector<2x32x128xf32>
    %c1_7 = arith.constant 1 : index
    %c0_8 = arith.constant 0 : index
    %18 = memref.load %arg1[%c1_7, %c0_8] : memref<3x3xf32, #tpu.memory_space<smem>>
    %19 = vector.extract_strided_slice %0 {offsets = [0, 0, 1], sizes = [2, 32, 128], strides = [1, 1, 1]} : vector<2x34x130xf32> to vector<2x32x128xf32>
    %20 = vector.broadcast %18 : f32 to vector<2x32x128xf32>
    %21 = arith.mulf %20, %19 : vector<2x32x128xf32>
    %22 = arith.addf %17, %21 : vector<2x32x128xf32>
    %c1_9 = arith.constant 1 : index
    %c1_10 = arith.constant 1 : index
    %23 = memref.load %arg1[%c1_9, %c1_10] : memref<3x3xf32, #tpu.memory_space<smem>>
    %24 = vector.extract_strided_slice %0 {offsets = [0, 1, 1], sizes = [2, 32, 128], strides = [1, 1, 1]} : vector<2x34x130xf32> to vector<2x32x128xf32>
    %25 = vector.broadcast %23 : f32 to vector<2x32x128xf32>
    %26 = arith.mulf %25, %24 : vector<2x32x128xf32>
    %27 = arith.addf %22, %26 : vector<2x32x128xf32>
    %c1_11 = arith.constant 1 : index
    %c2_12 = arith.constant 2 : index
    %28 = memref.load %arg1[%c1_11, %c2_12] : memref<3x3xf32, #tpu.memory_space<smem>>
    %29 = vector.extract_strided_slice %0 {offsets = [0, 2, 1], sizes = [2, 32, 128], strides = [1, 1, 1]} : vector<2x34x130xf32> to vector<2x32x128xf32>
    %30 = vector.broadcast %28 : f32 to vector<2x32x128xf32>
    %31 = arith.mulf %30, %29 : vector<2x32x128xf32>
    %32 = arith.addf %27, %31 : vector<2x32x128xf32>
    %c2_13 = arith.constant 2 : index
    %c0_14 = arith.constant 0 : index
    %33 = memref.load %arg1[%c2_13, %c0_14] : memref<3x3xf32, #tpu.memory_space<smem>>
    %34 = vector.extract_strided_slice %0 {offsets = [0, 0, 2], sizes = [2, 32, 128], strides = [1, 1, 1]} : vector<2x34x130xf32> to vector<2x32x128xf32>
    %35 = vector.broadcast %33 : f32 to vector<2x32x128xf32>
    %36 = arith.mulf %35, %34 : vector<2x32x128xf32>
    %37 = arith.addf %32, %36 : vector<2x32x128xf32>
    %c2_15 = arith.constant 2 : index
    %c1_16 = arith.constant 1 : index
    %38 = memref.load %arg1[%c2_15, %c1_16] : memref<3x3xf32, #tpu.memory_space<smem>>
    %39 = vector.extract_strided_slice %0 {offsets = [0, 1, 2], sizes = [2, 32, 128], strides = [1, 1, 1]} : vector<2x34x130xf32> to vector<2x32x128xf32>
    %40 = vector.broadcast %38 : f32 to vector<2x32x128xf32>
    %41 = arith.mulf %40, %39 : vector<2x32x128xf32>
    %42 = arith.addf %37, %41 : vector<2x32x128xf32>
    %c2_17 = arith.constant 2 : index
    %c2_18 = arith.constant 2 : index
    %43 = memref.load %arg1[%c2_17, %c2_18] : memref<3x3xf32, #tpu.memory_space<smem>>
    %44 = vector.extract_strided_slice %0 {offsets = [0, 2, 2], sizes = [2, 32, 128], strides = [1, 1, 1]} : vector<2x34x130xf32> to vector<2x32x128xf32>
    %45 = vector.broadcast %43 : f32 to vector<2x32x128xf32>
    %46 = arith.mulf %45, %44 : vector<2x32x128xf32>
    %47 = arith.addf %42, %46 : vector<2x32x128xf32>
    %cst = arith.constant dense<0xFF800000> : vector<32x128xf32>
    %48 = vector.multi_reduction <maximumf>, %47, %cst [0] : vector<2x32x128xf32> to vector<32x128xf32>
    %c0_19 = arith.constant 0 : index
    %c0_20 = arith.constant 0 : index
    %49 = vector.load %arg4[%c0_19, %c0_20] : memref<32x128xf32, #tpu.memory_space<vmem>>, vector<32x128xf32>
    tpu.vector_store %arg4[%c0_19, %c0_20], %48 {strides = array<i32>} : memref<32x128xf32, #tpu.memory_space<vmem>>, vector<32x128xf32>,
    return
  }
  func.func @transform_0(%arg0: i32) -> (i32, i32) {
    %c0_i32 = arith.constant 0 : i32
    %c0_i32_0 = arith.constant 0 : i32
    %c0_i32_1 = arith.constant 0 : i32
    return %c0_i32, %c0_i32_0 : i32, i32
  }
  func.func @transform_1(%arg0: i32) -> i32 {
    %c0_i32 = arith.constant 0 : i32
    %c0_i32_0 = arith.constant 0 : i32
    return %c0_i32 : i32
  }
  func.func @transform_2(%arg0: i32) -> (i32, i32, i32) {
    %c0_i32 = arith.constant 0 : i32
    %c0_i32_0 = arith.constant 0 : i32
    %c0_i32_1 = arith.constant 0 : i32
    %c0_i32_2 = arith.constant 0 : i32
    return %c0_i32, %c0_i32_0, %c0_i32_1 : i32, i32, i32
  }
  func.func @transform_3(%arg0: i32) -> (i32, i32) {
    %c0_i32 = arith.constant 0 : i32
    %c0_i32_0 = arith.constant 0 : i32
    %c0_i32_1 = arith.constant 0 : i32
    return %c0_i32, %c0_i32_0 : i32, i32
  }
}

</mosaic_0001>

<llo_original>
// kernel: tpu_custom_call.1
$region0: #{tpu_custom_call.1}
  #allocation0 [shape = 'u32[]', space=smem, size = 0x4, offset = 0x4, fixed_abs, tag = 'smem constant byte address 0x4 - core index']
  #allocation1 [shape = 'u32[144,128]{1,0:T(1,128)}', space=vmem, size = 0x12000, scoped, tag = 'internal scratch']
  #allocation2 [shape = 'f32[1]{0:T(128)S(6)}', space=smem, size = 0x200, scoped, tag = 'scoped memory for tpu_custom_call.1']
  %s0 = inlined_call_operand.vmem [shape: f32[3,3], index: 0, kind: input, shape index: {}]
  %s1 = inlined_call_operand.<no memory space> [shape: f32[1], index: 1, kind: input, shape index: {}]
  %s2 = inlined_call_operand.vmem [shape: f32[2,34,130], index: 2, kind: input, shape index: {}]
  %s3 = inlined_call_operand.hbm [shape: f32[32,128], index: 3, kind: output, shape index: {}]
  %s4 = sld [smem:[#allocation0]]
  $region26: #{tpu_custom_call.1} parent=0
    _
  %s6 = ssub.s32 1, %s4
  %s7 = scalar_select 0, %s6, %s4
  %8 = sst [smem:[#allocation2]] %s1
  $region1: #{tpu_custom_call.1} parent=0
    #allocation3 [shape = 'u8[2048]{0}', space=smem, size = 0x800, scoped, tag = 'input window, operand 0, single buffered']
    #allocation4 [shape = 's32[1]{0}', space=sflag, size = 0x4, scoped, tag = 'scoped memory for tpu_custom_call.1']
    #allocation5 [shape = 's32[1]{0}', space=sflag, size = 0x4, scoped, tag = 'scoped memory for tpu_custom_call.1']
    #allocation6 [shape = 'u8[16384]{0}', space=vmem, size = 0x4000, scoped, tag = 'output window, operand 0, single buffered']
    %9 = vsyncpa [#allocation5], 0
    %10 = vsyncpa [#allocation4], 0
    // Predicated region
    $region2: #{tpu_custom_call.1} parent=1 // pred_check
      _
    $region3: #{tpu_custom_call.1} parent=1 // pred_check_branch
      %12 = sbr.rel (0) target = $region5
    $region4: #{tpu_custom_call.1} parent=1 // pred_region
      %s14 = ssub.s32 64, 64
      %15 = vsyncadd [#allocation5], %s14
      %s17 = sshll.u32 %s0, 4
      %s18 = int_to_ptr.vmem [resolvable:$true] %s17
      %20 = dma.vmem_to_smem %s18, 64, [#allocation3], [#allocation5]
    $region5: #{tpu_custom_call.1} parent=1 // pred_fallthru
      _
    // Predicated region
    $region6: #{tpu_custom_call.1} parent=1 // pred_check
      _
    $region7: #{tpu_custom_call.1} parent=1 // pred_check_branch
      %22 = sbr.rel (0) target = $region9
    $region8: #{tpu_custom_call.1} parent=1 // pred_region
      _
    $region9: #{tpu_custom_call.1} parent=1 // pred_fallthru
      _
    // Predicated region
    $region10: #{tpu_custom_call.1} parent=1 // pred_check
      _
    $region11: #{tpu_custom_call.1} parent=1 // pred_check_branch
      %24 = sbr.rel (0) target = $region13
    $region12: #{tpu_custom_call.1} parent=1 // pred_region
      _
    $region13: #{tpu_custom_call.1} parent=1 // pred_fallthru
      _
    // Predicated region
    $region14: #{tpu_custom_call.1} parent=1 // pred_check
      _
    $region15: #{tpu_custom_call.1} parent=1 // pred_check_branch
      %26 = sbr.rel (0) target = $region17
    $region16: #{tpu_custom_call.1} parent=1 // pred_region
      %27 = dma.done [#allocation5], 64
    $region17: #{tpu_custom_call.1} parent=1 // pred_fallthru
      _
    %28 = sfence
    %v29 = vld [vmem:[%s2] sm:$0xff]
    %v30 = vld [vmem:[%s2 + $0x8] sm:$0xff]
    %v31 = vld [vmem:[%s2 + $0x10] sm:$0xff]
    %v32 = vld [vmem:[%s2 + $0x18] sm:$0xff]
    %v33 = vld [vmem:[%s2 + $0x20] sm:$0xff]
    %v34 = vld [vmem:[%s2 + $0x28] sm:$0xff]
    %v35 = vld [vmem:[%s2 + $0x30] sm:$0xff]
    %v36 = vld [vmem:[%s2 + $0x38] sm:$0xff]
    %v37 = vld [vmem:[%s2 + $0x40] sm:$0x3]
    %v38 = vld [vmem:[%s2 + $0x48] sm:$0x3]
    %v39 = vld [vmem:[%s2 + $0x50] sm:$0xff]
    %v40 = vld [vmem:[%s2 + $0x58] sm:$0xff]
    %v41 = vld [vmem:[%s2 + $0x60] sm:$0xff]
    %v42 = vld [vmem:[%s2 + $0x68] sm:$0xff]
    %v43 = vld [vmem:[%s2 + $0x70] sm:$0xff]
    %v44 = vld [vmem:[%s2 + $0x78] sm:$0xff]
    %v45 = vld [vmem:[%s2 + $0x80] sm:$0xff]
    %v46 = vld [vmem:[%s2 + $0x88] sm:$0xff]
    %v47 = vld [vmem:[%s2 + $0x90] sm:$0x3]
    %v48 = vld [vmem:[%s2 + $0x98] sm:$0x3]
    %s49 = sld [smem:[#allocation2]]
    %v50 = vstv %s49
    %s51 = sld [smem:[#allocation3]]
    %v52 = vstv %s51
    %v53 = vmul.f32 %v52, %v29
    %v54 = vmul.f32 %v52, %v31
    %v55 = vmul.f32 %v52, %v33
    %v56 = vmul.f32 %v52, %v35
    %v57 = vmul.f32 %v52, %v39
    %v58 = vmul.f32 %v52, %v41
    %v59 = vmul.f32 %v52, %v43
    %v60 = vmul.f32 %v52, %v45
    %v61 = vadd.f32 %v50, %v53
    %v62 = vadd.f32 %v50, %v54
    %v63 = vadd.f32 %v50, %v55
    %v64 = vadd.f32 %v50, %v56
    %v65 = vadd.f32 %v50, %v57
    %v66 = vadd.f32 %v50, %v58
    %v67 = vadd.f32 %v50, %v59
    %v68 = vadd.f32 %v50, %v60
    %s69 = sld [smem:[#allocation3 + $0x1]]
    %v70 = vstv %s69
    %v71 = vmul.f32 %v70, %v29
    %v72 = vmul.f32 %v70, %v31
    %v73 = vmul.f32 %v70, %v33
    %v74 = vmul.f32 %v70, %v35
    %v75 = vmul.f32 %v70, %v37
    %v76 = vmul.f32 %v70, %v39
    %v77 = vmul.f32 %v70, %v41
    %v78 = vmul.f32 %v70, %v43
    %v79 = vmul.f32 %v70, %v45
    %v80 = vmul.f32 %v70, %v47
    %vm91 = vcmask 1046528
    %v92 = vrot.slane %v71, 1
    %v93 = vrot.slane %v72, 1
    %v94 = vsel %vm91, %v92, %v93
    %v95 = vrot.slane %v73, 1
    %v96 = vsel %vm91, %v93, %v95
    %v97 = vrot.slane %v74, 1
    %v98 = vsel %vm91, %v95, %v97
    %v99 = vrot.slane %v75, 1
    %v100 = vsel %vm91, %v97, %v99
    %v101 = vrot.slane %v76, 1
    %v102 = vrot.slane %v77, 1
    %v103 = vsel %vm91, %v101, %v102
    %v104 = vrot.slane %v78, 1
    %v105 = vsel %vm91, %v102, %v104
    %v106 = vrot.slane %v79, 1
    %v107 = vsel %vm91, %v104, %v106
    %v108 = vrot.slane %v80, 1
    %v109 = vsel %vm91, %v106, %v108
    %v118 = vadd.f32 %v61, %v94
    %v119 = vadd.f32 %v62, %v96
    %v120 = vadd.f32 %v63, %v98
    %v121 = vadd.f32 %v64, %v100
    %v122 = vadd.f32 %v65, %v103
    %v123 = vadd.f32 %v66, %v105
    %v124 = vadd.f32 %v67, %v107
    %v125 = vadd.f32 %v68, %v109
    %s126 = sld [smem:[#allocation3 + $0x2]]
    %v127 = vstv %s126
    %v128 = vmul.f32 %v127, %v29
    %v129 = vmul.f32 %v127, %v31
    %v130 = vmul.f32 %v127, %v33
    %v131 = vmul.f32 %v127, %v35
    %v132 = vmul.f32 %v127, %v37
    %v133 = vmul.f32 %v127, %v39
    %v134 = vmul.f32 %v127, %v41
    %v135 = vmul.f32 %v127, %v43
    %v136 = vmul.f32 %v127, %v45
    %v137 = vmul.f32 %v127, %v47
    %vm148 = vcmask 1045504
    %v149 = vrot.slane %v128, 2
    %v150 = vrot.slane %v129, 2
    %v151 = vsel %vm148, %v149, %v150
    %v152 = vrot.slane %v130, 2
    %v153 = vsel %vm148, %v150, %v152
    %v154 = vrot.slane %v131, 2
    %v155 = vsel %vm148, %v152, %v154
    %v156 = vrot.slane %v132, 2
    %v157 = vsel %vm148, %v154, %v156
    %v158 = vrot.slane %v133, 2
    %v159 = vrot.slane %v134, 2
    %v160 = vsel %vm148, %v158, %v159
    %v161 = vrot.slane %v135, 2
    %v162 = vsel %vm148, %v159, %v161
    %v163 = vrot.slane %v136, 2
    %v164 = vsel %vm148, %v161, %v163
    %v165 = vrot.slane %v137, 2
    %v166 = vsel %vm148, %v163, %v165
    %v175 = vadd.f32 %v118, %v151
    %v176 = vadd.f32 %v119, %v153
    %v177 = vadd.f32 %v120, %v155
    %v178 = vadd.f32 %v121, %v157
    %v179 = vadd.f32 %v122, %v160
    %v180 = vadd.f32 %v123, %v162
    %v181 = vadd.f32 %v124, %v164
    %v182 = vadd.f32 %v125, %v166
    %s183 = sld [smem:[#allocation3 + $0x80]]
    %v184 = vstv %s183
    %v185 = vmul.f32 %v184, %v29
    %v186 = vmul.f32 %v184, %v30
    %v187 = vmul.f32 %v184, %v31
    %v188 = vmul.f32 %v184, %v32
    %v189 = vmul.f32 %v184, %v33
    %v190 = vmul.f32 %v184, %v34
    %v191 = vmul.f32 %v184, %v35
    %v192 = vmul.f32 %v184, %v36
    %v193 = vmul.f32 %v184, %v39
    %v194 = vmul.f32 %v184, %v40
    %v195 = vmul.f32 %v184, %v41
    %v196 = vmul.f32 %v184, %v42
    %v197 = vmul.f32 %v184, %v43
    %v198 = vmul.f32 %v184, %v44
    %v199 = vmul.f32 %v184, %v45
    %v200 = vmul.f32 %v184, %v46
    %217 = vrot.lane.b32.xlu0 %v185, 127
    %v218 = vpop.permute.xlu0 %217
    %219 = vrot.lane.b32.xlu0 %v186, 127
    %v220 = vpop.permute.xlu0 %219
    %221 = vrot.lane.b32.xlu0 %v187, 127
    %v222 = vpop.permute.xlu0 %221
    %223 = vrot.lane.b32.xlu0 %v188, 127
    %v224 = vpop.permute.xlu0 %223
    %225 = vrot.lane.b32.xlu0 %v189, 127
    %v226 = vpop.permute.xlu0 %225
    %227 = vrot.lane.b32.xlu0 %v190, 127
    %v228 = vpop.permute.xlu0 %227
    %229 = vrot.lane.b32.xlu0 %v191, 127
    %v230 = vpop.permute.xlu0 %229
    %231 = vrot.lane.b32.xlu0 %v192, 127
    %v232 = vpop.permute.xlu0 %231
    %233 = vrot.lane.b32.xlu0 %v193, 127
    %v234 = vpop.permute.xlu0 %233
    %235 = vrot.lane.b32.xlu0 %v194, 127
    %v236 = vpop.permute.xlu0 %235
    %237 = vrot.lane.b32.xlu0 %v195, 127
    %v238 = vpop.permute.xlu0 %237
    %239 = vrot.lane.b32.xlu0 %v196, 127
    %v240 = vpop.permute.xlu0 %239
    %241 = vrot.lane.b32.xlu0 %v197, 127
    %v242 = vpop.permute.xlu0 %241
    %243 = vrot.lane.b32.xlu0 %v198, 127
    %v244 = vpop.permute.xlu0 %243
    %245 = vrot.lane.b32.xlu0 %v199, 127
    %v246 = vpop.permute.xlu0 %245
    %247 = vrot.lane.b32.xlu0 %v200, 127
    %v248 = vpop.permute.xlu0 %247
    %vm249 = vcmask 1039360
    %v250 = vsel %vm249, %v218, %v220
    %v251 = vsel %vm249, %v222, %v224
    %v252 = vsel %vm249, %v226, %v228
    %v253 = vsel %vm249, %v230, %v232
    %v254 = vsel %vm249, %v234, %v236
    %v255 = vsel %vm249, %v238, %v240
    %v256 = vsel %vm249, %v242, %v244
    %v257 = vsel %vm249, %v246, %v248
    %v266 = vadd.f32 %v175, %v250
    %v267 = vadd.f32 %v176, %v251
    %v268 = vadd.f32 %v177, %v252
    %v269 = vadd.f32 %v178, %v253
    %v270 = vadd.f32 %v179, %v254
    %v271 = vadd.f32 %v180, %v255
    %v272 = vadd.f32 %v181, %v256
    %v273 = vadd.f32 %v182, %v257
    %s274 = sld [smem:[#allocation3 + $0x81]]
    %v275 = vstv %s274
    %v276 = vmul.f32 %v275, %v29
    %v277 = vmul.f32 %v275, %v30
    %v278 = vmul.f32 %v275, %v31
    %v279 = vmul.f32 %v275, %v32
    %v280 = vmul.f32 %v275, %v33
    %v281 = vmul.f32 %v275, %v34
    %v282 = vmul.f32 %v275, %v35
    %v283 = vmul.f32 %v275, %v36
    %v284 = vmul.f32 %v275, %v37
    %v285 = vmul.f32 %v275, %v38
    %v286 = vmul.f32 %v275, %v39
    %v287 = vmul.f32 %v275, %v40
    %v288 = vmul.f32 %v275, %v41
    %v289 = vmul.f32 %v275, %v42
    %v290 = vmul.f32 %v275, %v43
    %v291 = vmul.f32 %v275, %v44
    %v292 = vmul.f32 %v275, %v45
    %v293 = vmul.f32 %v275, %v46
    %v294 = vmul.f32 %v275, %v47
    %v295 = vmul.f32 %v275, %v48
    %v316 = vrot.slane %v276, 1
    %v317 = vrot.slane %v278, 1
    %v318 = vsel %vm91, %v316, %v317
    %v319 = vrot.slane %v277, 1
    %v320 = vrot.slane %v279, 1
    %v321 = vsel %vm91, %v319, %v320
    %v322 = vrot.slane %v280, 1
    %v323 = vsel %vm91, %v317, %v322
    %v324 = vrot.slane %v281, 1
    %v325 = vsel %vm91, %v320, %v324
    %v326 = vrot.slane %v282, 1
    %v327 = vsel %vm91, %v322, %v326
    %v328 = vrot.slane %v283, 1
    %v329 = vsel %vm91, %v324, %v328
    %v330 = vrot.slane %v284, 1
    %v331 = vsel %vm91, %v326, %v330
    %v332 = vrot.slane %v285, 1
    %v333 = vsel %vm91, %v328, %v332
    %v334 = vrot.slane %v286, 1
    %v335 = vrot.slane %v288, 1
    %v336 = vsel %vm91, %v334, %v335
    %v337 = vrot.slane %v287, 1
    %v338 = vrot.slane %v289, 1
    %v339 = vsel %vm91, %v337, %v338
    %v340 = vrot.slane %v290, 1
    %v341 = vsel %vm91, %v335, %v340
    %v342 = vrot.slane %v291, 1
    %v343 = vsel %vm91, %v338, %v342
    %v344 = vrot.slane %v292, 1
    %v345 = vsel %vm91, %v340, %v344
    %v346 = vrot.slane %v293, 1
    %v347 = vsel %vm91, %v342, %v346
    %v348 = vrot.slane %v294, 1
    %v349 = vsel %vm91, %v344, %v348
    %v350 = vrot.slane %v295, 1
    %v351 = vsel %vm91, %v346, %v350
    %352 = vrot.lane.b32.xlu0 %v318, 127
    %v353 = vpop.permute.xlu0 %352
    %354 = vrot.lane.b32.xlu0 %v321, 127
    %v355 = vpop.permute.xlu0 %354
    %356 = vrot.lane.b32.xlu0 %v323, 127
    %v357 = vpop.permute.xlu0 %356
    %358 = vrot.lane.b32.xlu0 %v325, 127
    %v359 = vpop.permute.xlu0 %358
    %360 = vrot.lane.b32.xlu0 %v327, 127
    %v361 = vpop.permute.xlu0 %360
    %362 = vrot.lane.b32.xlu0 %v329, 127
    %v363 = vpop.permute.xlu0 %362
    %364 = vrot.lane.b32.xlu0 %v331, 127
    %v365 = vpop.permute.xlu0 %364
    %366 = vrot.lane.b32.xlu0 %v333, 127
    %v367 = vpop.permute.xlu0 %366
    %368 = vrot.lane.b32.xlu0 %v336, 127
    %v369 = vpop.permute.xlu0 %368
    %370 = vrot.lane.b32.xlu0 %v339, 127
    %v371 = vpop.permute.xlu0 %370
    %372 = vrot.lane.b32.xlu0 %v341, 127
    %v373 = vpop.permute.xlu0 %372
    %374 = vrot.lane.b32.xlu0 %v343, 127
    %v375 = vpop.permute.xlu0 %374
    %376 = vrot.lane.b32.xlu0 %v345, 127
    %v377 = vpop.permute.xlu0 %376
    %378 = vrot.lane.b32.xlu0 %v347, 127
    %v379 = vpop.permute.xlu0 %378
    %380 = vrot.lane.b32.xlu0 %v349, 127
    %v381 = vpop.permute.xlu0 %380
    %382 = vrot.lane.b32.xlu0 %v351, 127
    %v383 = vpop.permute.xlu0 %382
    %v384 = vsel %vm249, %v353, %v355
    %v385 = vsel %vm249, %v357, %v359
    %v386 = vsel %vm249, %v361, %v363
    %v387 = vsel %vm249, %v365, %v367
    %v388 = vsel %vm249, %v369, %v371
    %v389 = vsel %vm249, %v373, %v375
    %v390 = vsel %vm249, %v377, %v379
    %v391 = vsel %vm249, %v381, %v383
    %v400 = vadd.f32 %v266, %v384
    %v401 = vadd.f32 %v267, %v385
    %v402 = vadd.f32 %v268, %v386
    %v403 = vadd.f32 %v269, %v387
    %v404 = vadd.f32 %v270, %v388
    %v405 = vadd.f32 %v271, %v389
    %v406 = vadd.f32 %v272, %v390
    %v407 = vadd.f32 %v273, %v391
    %s408 = sld [smem:[#allocation3 + $0x82]]
    %v409 = vstv %s408
    %v410 = vmul.f32 %v409, %v29
    %v411 = vmul.f32 %v409, %v30
    %v412 = vmul.f32 %v409, %v31
    %v413 = vmul.f32 %v409, %v32
    %v414 = vmul.f32 %v409, %v33
    %v415 = vmul.f32 %v409, %v34
    %v416 = vmul.f32 %v409, %v35
    %v417 = vmul.f32 %v409, %v36
    %v418 = vmul.f32 %v409, %v37
    %v419 = vmul.f32 %v409, %v38
    %v420 = vmul.f32 %v409, %v39
    %v421 = vmul.f32 %v409, %v40
    %v422 = vmul.f32 %v409, %v41
    %v423 = vmul.f32 %v409, %v42
    %v424 = vmul.f32 %v409, %v43
    %v425 = vmul.f32 %v409, %v44
    %v426 = vmul.f32 %v409, %v45
    %v427 = vmul.f32 %v409, %v46
    %v428 = vmul.f32 %v409, %v47
    %v429 = vmul.f32 %v409, %v48
    %v450 = vrot.slane %v410, 2
    %v451 = vrot.slane %v412, 2
    %v452 = vsel %vm148, %v450, %v451
    %v453 = vrot.slane %v411, 2
    %v454 = vrot.slane %v413, 2
    %v455 = vsel %vm148, %v453, %v454
    %v456 = vrot.slane %v414, 2
    %v457 = vsel %vm148, %v451, %v456
    %v458 = vrot.slane %v415, 2
    %v459 = vsel %vm148, %v454, %v458
    %v460 = vrot.slane %v416, 2
    %v461 = vsel %vm148, %v456, %v460
    %v462 = vrot.slane %v417, 2
    %v463 = vsel %vm148, %v458, %v462
    %v464 = vrot.slane %v418, 2
    %v465 = vsel %vm148, %v460, %v464
    %v466 = vrot.slane %v419, 2
    %v467 = vsel %vm148, %v462, %v466
    %v468 = vrot.slane %v420, 2
    %v469 = vrot.slane %v422, 2
    %v470 = vsel %vm148, %v468, %v469
    %v471 = vrot.slane %v421, 2
    %v472 = vrot.slane %v423, 2
    %v473 = vsel %vm148, %v471, %v472
    %v474 = vrot.slane %v424, 2
    %v475 = vsel %vm148, %v469, %v474
    %v476 = vrot.slane %v425, 2
    %v477 = vsel %vm148, %v472, %v476
    %v478 = vrot.slane %v426, 2
    %v479 = vsel %vm148, %v474, %v478
    %v480 = vrot.slane %v427, 2
    %v481 = vsel %vm148, %v476, %v480
    %v482 = vrot.slane %v428, 2
    %v483 = vsel %vm148, %v478, %v482
    %v484 = vrot.slane %v429, 2
    %v485 = vsel %vm148, %v480, %v484
    %486 = vrot.lane.b32.xlu0 %v452, 127
    %v487 = vpop.permute.xlu0 %486
    %488 = vrot.lane.b32.xlu0 %v455, 127
    %v489 = vpop.permute.xlu0 %488
    %490 = vrot.lane.b32.xlu0 %v457, 127
    %v491 = vpop.permute.xlu0 %490
    %492 = vrot.lane.b32.xlu0 %v459, 127
    %v493 = vpop.permute.xlu0 %492
    %494 = vrot.lane.b32.xlu0 %v461, 127
    %v495 = vpop.permute.xlu0 %494
    %496 = vrot.lane.b32.xlu0 %v463, 127
    %v497 = vpop.permute.xlu0 %496
    %498 = vrot.lane.b32.xlu0 %v465, 127
    %v499 = vpop.permute.xlu0 %498
    %500 = vrot.lane.b32.xlu0 %v467, 127
    %v501 = vpop.permute.xlu0 %500
    %502 = vrot.lane.b32.xlu0 %v470, 127
    %v503 = vpop.permute.xlu0 %502
    %504 = vrot.lane.b32.xlu0 %v473, 127
    %v505 = vpop.permute.xlu0 %504
    %506 = vrot.lane.b32.xlu0 %v475, 127
    %v507 = vpop.permute.xlu0 %506
    %508 = vrot.lane.b32.xlu0 %v477, 127
    %v509 = vpop.permute.xlu0 %508
    %510 = vrot.lane.b32.xlu0 %v479, 127
    %v511 = vpop.permute.xlu0 %510
    %512 = vrot.lane.b32.xlu0 %v481, 127
    %v513 = vpop.permute.xlu0 %512
    %514 = vrot.lane.b32.xlu0 %v483, 127
    %v515 = vpop.permute.xlu0 %514
    %516 = vrot.lane.b32.xlu0 %v485, 127
    %v517 = vpop.permute.xlu0 %516
    %v518 = vsel %vm249, %v487, %v489
    %v519 = vsel %vm249, %v491, %v493
    %v520 = vsel %vm249, %v495, %v497
    %v521 = vsel %vm249, %v499, %v501
    %v522 = vsel %vm249, %v503, %v505
    %v523 = vsel %vm249, %v507, %v509
    %v524 = vsel %vm249, %v511, %v513
    %v525 = vsel %vm249, %v515, %v517
    %v534 = vadd.f32 %v400, %v518
    %v535 = vadd.f32 %v401, %v519
    %v536 = vadd.f32 %v402, %v520
    %v537 = vadd.f32 %v403, %v521
    %v538 = vadd.f32 %v404, %v522
    %v539 = vadd.f32 %v405, %v523
    %v540 = vadd.f32 %v406, %v524
    %v541 = vadd.f32 %v407, %v525
    %s542 = sld [smem:[#allocation3 + $0x100]]
    %v543 = vstv %s542
    %v544 = vmul.f32 %v543, %v29
    %v545 = vmul.f32 %v543, %v30
    %v546 = vmul.f32 %v543, %v31
    %v547 = vmul.f32 %v543, %v32
    %v548 = vmul.f32 %v543, %v33
    %v549 = vmul.f32 %v543, %v34
    %v550 = vmul.f32 %v543, %v35
    %v551 = vmul.f32 %v543, %v36
    %v552 = vmul.f32 %v543, %v39
    %v553 = vmul.f32 %v543, %v40
    %v554 = vmul.f32 %v543, %v41
    %v555 = vmul.f32 %v543, %v42
    %v556 = vmul.f32 %v543, %v43
    %v557 = vmul.f32 %v543, %v44
    %v558 = vmul.f32 %v543, %v45
    %v559 = vmul.f32 %v543, %v46
    %576 = vrot.lane.b32.xlu0 %v544, 126
    %v577 = vpop.permute.xlu0 %576
    %578 = vrot.lane.b32.xlu0 %v545, 126
    %v579 = vpop.permute.xlu0 %578
    %580 = vrot.lane.b32.xlu0 %v546, 126
    %v581 = vpop.permute.xlu0 %580
    %582 = vrot.lane.b32.xlu0 %v547, 126
    %v583 = vpop.permute.xlu0 %582
    %584 = vrot.lane.b32.xlu0 %v548, 126
    %v585 = vpop.permute.xlu0 %584
    %586 = vrot.lane.b32.xlu0 %v549, 126
    %v587 = vpop.permute.xlu0 %586
    %588 = vrot.lane.b32.xlu0 %v550, 126
    %v589 = vpop.permute.xlu0 %588
    %590 = vrot.lane.b32.xlu0 %v551, 126
    %v591 = vpop.permute.xlu0 %590
    %592 = vrot.lane.b32.xlu0 %v552, 126
    %v593 = vpop.permute.xlu0 %592
    %594 = vrot.lane.b32.xlu0 %v553, 126
    %v595 = vpop.permute.xlu0 %594
    %596 = vrot.lane.b32.xlu0 %v554, 126
    %v597 = vpop.permute.xlu0 %596
    %598 = vrot.lane.b32.xlu0 %v555, 126
    %v599 = vpop.permute.xlu0 %598
    %600 = vrot.lane.b32.xlu0 %v556, 126
    %v601 = vpop.permute.xlu0 %600
    %602 = vrot.lane.b32.xlu0 %v557, 126
    %v603 = vpop.permute.xlu0 %602
    %604 = vrot.lane.b32.xlu0 %v558, 126
    %v605 = vpop.permute.xlu0 %604
    %606 = vrot.lane.b32.xlu0 %v559, 126
    %v607 = vpop.permute.xlu0 %606
    %vm608 = vcmask 1031168
    %v609 = vsel %vm608, %v577, %v579
    %v610 = vsel %vm608, %v581, %v583
    %v611 = vsel %vm608, %v585, %v587
    %v612 = vsel %vm608, %v589, %v591
    %v613 = vsel %vm608, %v593, %v595
    %v614 = vsel %vm608, %v597, %v599
    %v615 = vsel %vm608, %v601, %v603
    %v616 = vsel %vm608, %v605, %v607
    %v625 = vadd.f32 %v534, %v609
    %v626 = vadd.f32 %v535, %v610
    %v627 = vadd.f32 %v536, %v611
    %v628 = vadd.f32 %v537, %v612
    %v629 = vadd.f32 %v538, %v613
    %v630 = vadd.f32 %v539, %v614
    %v631 = vadd.f32 %v540, %v615
    %v632 = vadd.f32 %v541, %v616
    %s633 = sld [smem:[#allocation3 + $0x101]]
    %v634 = vstv %s633
    %v635 = vmul.f32 %v634, %v29
    %v636 = vmul.f32 %v634, %v30
    %v637 = vmul.f32 %v634, %v31
    %v638 = vmul.f32 %v634, %v32
    %v639 = vmul.f32 %v634, %v33
    %v640 = vmul.f32 %v634, %v34
    %v641 = vmul.f32 %v634, %v35
    %v642 = vmul.f32 %v634, %v36
    %v643 = vmul.f32 %v634, %v37
    %v644 = vmul.f32 %v634, %v38
    %v645 = vmul.f32 %v634, %v39
    %v646 = vmul.f32 %v634, %v40
    %v647 = vmul.f32 %v634, %v41
    %v648 = vmul.f32 %v634, %v42
    %v649 = vmul.f32 %v634, %v43
    %v650 = vmul.f32 %v634, %v44
    %v651 = vmul.f32 %v634, %v45
    %v652 = vmul.f32 %v634, %v46
    %v653 = vmul.f32 %v634, %v47
    %v654 = vmul.f32 %v634, %v48
    %v675 = vrot.slane %v635, 1
    %v676 = vrot.slane %v637, 1
    %v677 = vsel %vm91, %v675, %v676
    %v678 = vrot.slane %v636, 1
    %v679 = vrot.slane %v638, 1
    %v680 = vsel %vm91, %v678, %v679
    %v681 = vrot.slane %v639, 1
    %v682 = vsel %vm91, %v676, %v681
    %v683 = vrot.slane %v640, 1
    %v684 = vsel %vm91, %v679, %v683
    %v685 = vrot.slane %v641, 1
    %v686 = vsel %vm91, %v681, %v685
    %v687 = vrot.slane %v642, 1
    %v688 = vsel %vm91, %v683, %v687
    %v689 = vrot.slane %v643, 1
    %v690 = vsel %vm91, %v685, %v689
    %v691 = vrot.slane %v644, 1
    %v692 = vsel %vm91, %v687, %v691
    %v693 = vrot.slane %v645, 1
    %v694 = vrot.slane %v647, 1
    %v695 = vsel %vm91, %v693, %v694
    %v696 = vrot.slane %v646, 1
    %v697 = vrot.slane %v648, 1
    %v698 = vsel %vm91, %v696, %v697
    %v699 = vrot.slane %v649, 1
    %v700 = vsel %vm91, %v694, %v699
    %v701 = vrot.slane %v650, 1
    %v702 = vsel %vm91, %v697, %v701
    %v703 = vrot.slane %v651, 1
    %v704 = vsel %vm91, %v699, %v703
    %v705 = vrot.slane %v652, 1
    %v706 = vsel %vm91, %v701, %v705
    %v707 = vrot.slane %v653, 1
    %v708 = vsel %vm91, %v703, %v707
    %v709 = vrot.slane %v654, 1
    %v710 = vsel %vm91, %v705, %v709
    %711 = vrot.lane.b32.xlu0 %v677, 126
    %v712 = vpop.permute.xlu0 %711
    %713 = vrot.lane.b32.xlu0 %v680, 126
    %v714 = vpop.permute.xlu0 %713
    %715 = vrot.lane.b32.xlu0 %v682, 126
    %v716 = vpop.permute.xlu0 %715
    %717 = vrot.lane.b32.xlu0 %v684, 126
    %v718 = vpop.permute.xlu0 %717
    %719 = vrot.lane.b32.xlu0 %v686, 126
    %v720 = vpop.permute.xlu0 %719
    %721 = vrot.lane.b32.xlu0 %v688, 126
    %v722 = vpop.permute.xlu0 %721
    %723 = vrot.lane.b32.xlu0 %v690, 126
    %v724 = vpop.permute.xlu0 %723
    %725 = vrot.lane.b32.xlu0 %v692, 126
    %v726 = vpop.permute.xlu0 %725
    %727 = vrot.lane.b32.xlu0 %v695, 126
    %v728 = vpop.permute.xlu0 %727
    %729 = vrot.lane.b32.xlu0 %v698, 126
    %v730 = vpop.permute.xlu0 %729
    %731 = vrot.lane.b32.xlu0 %v700, 126
    %v732 = vpop.permute.xlu0 %731
    %733 = vrot.lane.b32.xlu0 %v702, 126
    %v734 = vpop.permute.xlu0 %733
    %735 = vrot.lane.b32.xlu0 %v704, 126
    %v736 = vpop.permute.xlu0 %735
    %737 = vrot.lane.b32.xlu0 %v706, 126
    %v738 = vpop.permute.xlu0 %737
    %739 = vrot.lane.b32.xlu0 %v708, 126
    %v740 = vpop.permute.xlu0 %739
    %741 = vrot.lane.b32.xlu0 %v710, 126
    %v742 = vpop.permute.xlu0 %741
    %v743 = vsel %vm608, %v712, %v714
    %v744 = vsel %vm608, %v716, %v718
    %v745 = vsel %vm608, %v720, %v722
    %v746 = vsel %vm608, %v724, %v726
    %v747 = vsel %vm608, %v728, %v730
    %v748 = vsel %vm608, %v732, %v734
    %v749 = vsel %vm608, %v736, %v738
    %v750 = vsel %vm608, %v740, %v742
    %v759 = vadd.f32 %v625, %v743
    %v760 = vadd.f32 %v626, %v744
    %v761 = vadd.f32 %v627, %v745
    %v762 = vadd.f32 %v628, %v746
    %v763 = vadd.f32 %v629, %v747
    %v764 = vadd.f32 %v630, %v748
    %v765 = vadd.f32 %v631, %v749
    %v766 = vadd.f32 %v632, %v750
    %s767 = sld [smem:[#allocation3 + $0x102]]
    %v768 = vstv %s767
    %v769 = vmul.f32 %v768, %v29
    %v770 = vmul.f32 %v768, %v30
    %v771 = vmul.f32 %v768, %v31
    %v772 = vmul.f32 %v768, %v32
    %v773 = vmul.f32 %v768, %v33
    %v774 = vmul.f32 %v768, %v34
    %v775 = vmul.f32 %v768, %v35
    %v776 = vmul.f32 %v768, %v36
    %v777 = vmul.f32 %v768, %v37
    %v778 = vmul.f32 %v768, %v38
    %v779 = vmul.f32 %v768, %v39
    %v780 = vmul.f32 %v768, %v40
    %v781 = vmul.f32 %v768, %v41
    %v782 = vmul.f32 %v768, %v42
    %v783 = vmul.f32 %v768, %v43
    %v784 = vmul.f32 %v768, %v44
    %v785 = vmul.f32 %v768, %v45
    %v786 = vmul.f32 %v768, %v46
    %v787 = vmul.f32 %v768, %v47
    %v788 = vmul.f32 %v768, %v48
    %v809 = vrot.slane %v769, 2
    %v810 = vrot.slane %v771, 2
    %v811 = vsel %vm148, %v809, %v810
    %v812 = vrot.slane %v770, 2
    %v813 = vrot.slane %v772, 2
    %v814 = vsel %vm148, %v812, %v813
    %v815 = vrot.slane %v773, 2
    %v816 = vsel %vm148, %v810, %v815
    %v817 = vrot.slane %v774, 2
    %v818 = vsel %vm148, %v813, %v817
    %v819 = vrot.slane %v775, 2
    %v820 = vsel %vm148, %v815, %v819
    %v821 = vrot.slane %v776, 2
    %v822 = vsel %vm148, %v817, %v821
    %v823 = vrot.slane %v777, 2
    %v824 = vsel %vm148, %v819, %v823
    %v825 = vrot.slane %v778, 2
    %v826 = vsel %vm148, %v821, %v825
    %v827 = vrot.slane %v779, 2
    %v828 = vrot.slane %v781, 2
    %v829 = vsel %vm148, %v827, %v828
    %v830 = vrot.slane %v780, 2
    %v831 = vrot.slane %v782, 2
    %v832 = vsel %vm148, %v830, %v831
    %v833 = vrot.slane %v783, 2
    %v834 = vsel %vm148, %v828, %v833
    %v835 = vrot.slane %v784, 2
    %v836 = vsel %vm148, %v831, %v835
    %v837 = vrot.slane %v785, 2
    %v838 = vsel %vm148, %v833, %v837
    %v839 = vrot.slane %v786, 2
    %v840 = vsel %vm148, %v835, %v839
    %v841 = vrot.slane %v787, 2
    %v842 = vsel %vm148, %v837, %v841
    %v843 = vrot.slane %v788, 2
    %v844 = vsel %vm148, %v839, %v843
    %845 = vrot.lane.b32.xlu0 %v811, 126
    %v846 = vpop.permute.xlu0 %845
    %847 = vrot.lane.b32.xlu0 %v814, 126
    %v848 = vpop.permute.xlu0 %847
    %849 = vrot.lane.b32.xlu0 %v816, 126
    %v850 = vpop.permute.xlu0 %849
    %851 = vrot.lane.b32.xlu0 %v818, 126
    %v852 = vpop.permute.xlu0 %851
    %853 = vrot.lane.b32.xlu0 %v820, 126
    %v854 = vpop.permute.xlu0 %853
    %855 = vrot.lane.b32.xlu0 %v822, 126
    %v856 = vpop.permute.xlu0 %855
    %857 = vrot.lane.b32.xlu0 %v824, 126
    %v858 = vpop.permute.xlu0 %857
    %859 = vrot.lane.b32.xlu0 %v826, 126
    %v860 = vpop.permute.xlu0 %859
    %861 = vrot.lane.b32.xlu0 %v829, 126
    %v862 = vpop.permute.xlu0 %861
    %863 = vrot.lane.b32.xlu0 %v832, 126
    %v864 = vpop.permute.xlu0 %863
    %865 = vrot.lane.b32.xlu0 %v834, 126
    %v866 = vpop.permute.xlu0 %865
    %867 = vrot.lane.b32.xlu0 %v836, 126
    %v868 = vpop.permute.xlu0 %867
    %869 = vrot.lane.b32.xlu0 %v838, 126
    %v870 = vpop.permute.xlu0 %869
    %871 = vrot.lane.b32.xlu0 %v840, 126
    %v872 = vpop.permute.xlu0 %871
    %873 = vrot.lane.b32.xlu0 %v842, 126
    %v874 = vpop.permute.xlu0 %873
    %875 = vrot.lane.b32.xlu0 %v844, 126
    %v876 = vpop.permute.xlu0 %875
    %v877 = vsel %vm608, %v846, %v848
    %v878 = vsel %vm608, %v850, %v852
    %v879 = vsel %vm608, %v854, %v856
    %v880 = vsel %vm608, %v858, %v860
    %v881 = vsel %vm608, %v862, %v864
    %v882 = vsel %vm608, %v866, %v868
    %v883 = vsel %vm608, %v870, %v872
    %v884 = vsel %vm608, %v874, %v876
    %v893 = vadd.f32 %v759, %v877
    %v894 = vadd.f32 %v760, %v878
    %v895 = vadd.f32 %v761, %v879
    %v896 = vadd.f32 %v762, %v880
    %v897 = vadd.f32 %v763, %v881
    %v898 = vadd.f32 %v764, %v882
    %v899 = vadd.f32 %v765, %v883
    %v900 = vadd.f32 %v766, %v884
    %v901 = vmax.f32 %v893, %v897
    %v902 = vmax.f32 %v894, %v898
    %v903 = vmax.f32 %v895, %v899
    %v904 = vmax.f32 %v896, %v900
    %905 = vst [vmem:[#allocation6] sm:$0xff] %v901
    %906 = vst [vmem:[#allocation6 + $0x8] sm:$0xff] %v902
    %907 = vst [vmem:[#allocation6 + $0x10] sm:$0xff] %v903
    %908 = vst [vmem:[#allocation6 + $0x18] sm:$0xff] %v904
    // Predicated region
    $region18: #{tpu_custom_call.1} parent=1 // pred_check
      _
    $region19: #{tpu_custom_call.1} parent=1 // pred_check_branch
      %910 = sbr.rel (0) target = $region21
    $region20: #{tpu_custom_call.1} parent=1 // pred_region
      %s912 = ssub.s32 512, 512
      %913 = vsyncadd [#allocation4], %s912
      %s914 = sshll.u32 [#allocation6], 4
      %s915 = int_to_ptr.vmem [resolvable:$true] %s914
      %920 = dma.vmem_to_hbm [thread:$0]  %s915, 512, %s3, [#allocation4], 128, 128, 8
    $region21: #{tpu_custom_call.1} parent=1 // pred_fallthru
      _
    // Predicated region
    $region22: #{tpu_custom_call.1} parent=1 // pred_check
      _
    $region23: #{tpu_custom_call.1} parent=1 // pred_check_branch
      %922 = sbr.rel (0) target = $region25
    $region24: #{tpu_custom_call.1} parent=1 // pred_region
      %923 = dma.done [#allocation4], 512
    $region25: #{tpu_custom_call.1} parent=1 // pred_fallthru
      _
    %924 = vsyncpa [#allocation4], 1
    %925 = vsyncpa [#allocation5], 1

</llo_original>
